<compile_context>
chip_gen: v7x
topology: tpu7x:2x2x1
jax: 0.10.0
libtpu: 0.0.40
codegen_flags: <defaults>
</compile_context>

<pallas_src>
import jax
import jax.numpy as jnp
from jax.experimental import pallas as pl
from jax.experimental.pallas import tpu as pltpu


IN_DIM = 6
HIDDEN = 256
OUT_DIM = 10
DEFAULT_TILE_B = 2048   # rows per grid step (big tiles -> near HBM roofline)
MIN_GRID_STEPS = 2      # keep both v7x TensorCores busy when batch allows


def _round_up(x, m):
    return ((x + m - 1) // m) * m


def _mlp_kernel(z_ref, w1_ref, b1_ref, w2_ref, b2_ref, o_ref):
    # One batch tile per grid step; weights/biases are VMEM-resident.
    z = z_ref[...]                                                    # (TILE_B, 6)
    h = jnp.dot(z, w1_ref[...], preferred_element_type=jnp.float32)   # (TILE_B, 256)
    h = jnp.maximum(h + b1_ref[...], 0.0)                             # relu, no temp
    out = jnp.dot(h, w2_ref[...], preferred_element_type=jnp.float32)  # (TILE_B, 10)
    o_ref[...] = (out + b2_ref[...]).astype(o_ref.dtype)              # natural-width store


def _choose_tiling(batch):
    """Pick (tile_b, b_pad) with <8 rows of batch-pad waste and >=2 grid steps."""
    b8 = _round_up(max(batch, 1), 8)
    steps = max(MIN_GRID_STEPS, pl.cdiv(b8, DEFAULT_TILE_B))
    steps = max(1, min(steps, b8 // 8))          # never below 8 rows per step
    tile_b = _round_up(pl.cdiv(b8, steps), 8)
    b_pad = tile_b * pl.cdiv(b8, tile_b)
    return tile_b, b_pad


def interpolator_forward(z, w1, b1, w2, b2):
    """z: (B, 6) float32 -> (B, 10) float32.  Jit this wrapper."""
    B = z.shape[0]
    tile_b, b_pad = _choose_tiling(B)

    if b_pad != B:
        z = jnp.pad(z, ((0, b_pad - B), (0, 0)))

    grid = (b_pad // tile_b,)

    out = pl.pallas_call(
        _mlp_kernel,
        out_shape=jax.ShapeDtypeStruct((b_pad, OUT_DIM), jnp.float32),
        grid=grid,
        in_specs=[
            # Streaming input: one batch tile per step.
            pl.BlockSpec((tile_b, IN_DIM), lambda i: (i, 0)),
            # Resident weights / biases (constant index_map -> no re-fetch).
            pl.BlockSpec((IN_DIM, HIDDEN), lambda i: (0, 0)),
            pl.BlockSpec((1, HIDDEN), lambda i: (0, 0)),
            pl.BlockSpec((HIDDEN, OUT_DIM), lambda i: (0, 0)),
            pl.BlockSpec((1, OUT_DIM), lambda i: (0, 0)),
        ],
        # Last dim == full array dim (10), so the (8,128) rule is satisfied.
        out_specs=pl.BlockSpec((tile_b, OUT_DIM), lambda i: (i, 0)),
        compiler_params=pltpu.CompilerParams(
            dimension_semantics=("parallel",),
            vmem_limit_bytes=32 * 1024 * 1024,
        ),
    )(z, w1, b1, w2, b2)

    if b_pad != B:
        out = out[:B]
    return out


def init_params(key):
    """Deterministic init matching the PyTorch layer shapes.

    PyTorch stores fc.weight as (out, in); we keep the transposed (in, out)
    layout so the kernel multiplies without an in-kernel transpose.
    """
    k1, k2, k3, k4 = jax.random.split(key, 4)
    lim1 = 1.0 / jnp.sqrt(jnp.float32(IN_DIM))
    lim2 = 1.0 / jnp.sqrt(jnp.float32(HIDDEN))
    w1 = jax.random.uniform(k1, (IN_DIM, HIDDEN), jnp.float32, -lim1, lim1)
    b1 = jax.random.uniform(k2, (1, HIDDEN), jnp.float32, -lim1, lim1)
    w2 = jax.random.uniform(k3, (HIDDEN, OUT_DIM), jnp.float32, -lim2, lim2)
    b2 = jax.random.uniform(k4, (1, OUT_DIM), jnp.float32, -lim2, lim2)
    return w1, b1, w2, b2


def _reference_forward(z, w1, b1, w2, b2):
    h = jnp.maximum(z @ w1 + b1, 0.0)
    return h @ w2 + b2


if __name__ == "__main__":
    key = jax.random.PRNGKey(0)
    k_params, k_input = jax.random.split(key)

    w1, b1, w2, b2 = init_params(k_params)

    fwd = jax.jit(interpolator_forward)

    # Small demo batches: multiple-of-8, non-multiple-of-8 (padding path),
    # and one large enough to exercise a multi-step grid.
    for batch in (8, 13, 40):
        z = jax.random.normal(jax.random.fold_in(k_input, batch),
                              (batch, IN_DIM), jnp.float32)
        out = fwd(z, w1, b1, w2, b2)
        out = jax.block_until_ready(out)

        ref = _reference_forward(z, w1, b1, w2, b2)
        assert out.shape == (batch, OUT_DIM), out.shape
        assert jnp.allclose(out, ref, atol=1e-5, rtol=1e-5), "mismatch vs reference"

    print("KERNEL_OK")
</pallas_src>

<mosaic_0001>
module attributes {stable_mosaic.version = 11 : i64} {
  func.func @_mlp_kernel(%arg0: i32, %arg1: memref<8x6xf32, #tpu.memory_space<vmem>>, %arg2: memref<6x256xf32, #tpu.memory_space<vmem>>, %arg3: memref<1x256xf32, #tpu.memory_space<vmem>>, %arg4: memref<256x10xf32, #tpu.memory_space<vmem>>, %arg5: memref<1x10xf32, #tpu.memory_space<vmem>>, %arg6: memref<8x10xf32, #tpu.memory_space<vmem>>) attributes {dimension_semantics = [#tpu.dimension_semantics<parallel>], iteration_bounds = array<i64: 1>, scalar_prefetch = 0 : i64, scratch_operands = 0 : i64, tpu.core_type = #tpu.core_type<tc>, window_params = [{transform_indices = @transform_0, window_bounds = array<i64: 8, 6>}, {pipeline_mode = #tpu.pipeline_mode<synchronous>, transform_indices = @transform_1, window_bounds = array<i64: 6, 256>}, {pipeline_mode = #tpu.pipeline_mode<synchronous>, transform_indices = @transform_2, window_bounds = array<i64: 1, 256>}, {pipeline_mode = #tpu.pipeline_mode<synchronous>, transform_indices = @transform_3, window_bounds = array<i64: 256, 10>}, {pipeline_mode = #tpu.pipeline_mode<synchronous>, transform_indices = @transform_4, window_bounds = array<i64: 1, 10>}, {transform_indices = @transform_5, window_bounds = array<i64: 8, 10>}]} {
    %c0 = arith.constant 0 : index
    %c0_0 = arith.constant 0 : index
    %0 = vector.load %arg1[%c0, %c0_0] : memref<8x6xf32, #tpu.memory_space<vmem>>, vector<8x6xf32>
    %c0_1 = arith.constant 0 : index
    %c0_2 = arith.constant 0 : index
    %1 = vector.load %arg2[%c0_1, %c0_2] : memref<6x256xf32, #tpu.memory_space<vmem>>, vector<6x256xf32>
    %cst = arith.constant dense<0.000000e+00> : vector<8x256xf32>
    %2 = tpu.matmul %0, %1, %cst {dimension_numbers = #tpu.dot_dimension_numbers<[1], [0], [0], [1], [0, 0, 1, 1], [], []>} : vector<8x6xf32>, vector<6x256xf32>, vector<8x256xf32> -> vector<8x256xf32>
    %c0_3 = arith.constant 0 : index
    %c0_4 = arith.constant 0 : index
    %3 = vector.load %arg3[%c0_3, %c0_4] : memref<1x256xf32, #tpu.memory_space<vmem>>, vector<1x256xf32>
    %4 = vector.broadcast %3 : vector<1x256xf32> to vector<8x256xf32>
    %5 = arith.addf %2, %4 : vector<8x256xf32>
    %cst_5 = arith.constant 0.000000e+00 : f32
    %6 = vector.broadcast %cst_5 : f32 to vector<8x256xf32>
    %7 = arith.maximumf %5, %6 : vector<8x256xf32>
    %c0_6 = arith.constant 0 : index
    %c0_7 = arith.constant 0 : index
    %8 = vector.load %arg4[%c0_6, %c0_7] : memref<256x10xf32, #tpu.memory_space<vmem>>, vector<256x10xf32>
    %cst_8 = arith.constant dense<0.000000e+00> : vector<8x10xf32>
    %9 = tpu.matmul %7, %8, %cst_8 {dimension_numbers = #tpu.dot_dimension_numbers<[1], [0], [0], [1], [0, 0, 1, 1], [], []>} : vector<8x256xf32>, vector<256x10xf32>, vector<8x10xf32> -> vector<8x10xf32>
    %c0_9 = arith.constant 0 : index
    %c0_10 = arith.constant 0 : index
    %10 = vector.load %arg5[%c0_9, %c0_10] : memref<1x10xf32, #tpu.memory_space<vmem>>, vector<1x10xf32>
    %11 = vector.broadcast %10 : vector<1x10xf32> to vector<8x10xf32>
    %12 = arith.addf %9, %11 : vector<8x10xf32>
    %c0_11 = arith.constant 0 : index
    %c0_12 = arith.constant 0 : index
    %13 = vector.load %arg6[%c0_11, %c0_12] : memref<8x10xf32, #tpu.memory_space<vmem>>, vector<8x10xf32>
    tpu.vector_store %arg6[%c0_11, %c0_12], %12 {strides = array<i32>} : memref<8x10xf32, #tpu.memory_space<vmem>>, vector<8x10xf32>,
    return
  }
  func.func @transform_0(%arg0: i32) -> (i32, i32) {
    %c0_i32 = arith.constant 0 : i32
    %c0_i32_0 = arith.constant 0 : i32
    return %arg0, %c0_i32 : i32, i32
  }
  func.func @transform_1(%arg0: i32) -> (i32, i32) {
    %c0_i32 = arith.constant 0 : i32
    %c0_i32_0 = arith.constant 0 : i32
    %c0_i32_1 = arith.constant 0 : i32
    return %c0_i32, %c0_i32_0 : i32, i32
  }
  func.func @transform_2(%arg0: i32) -> (i32, i32) {
    %c0_i32 = arith.constant 0 : i32
    %c0_i32_0 = arith.constant 0 : i32
    %c0_i32_1 = arith.constant 0 : i32
    return %c0_i32, %c0_i32_0 : i32, i32
  }
  func.func @transform_3(%arg0: i32) -> (i32, i32) {
    %c0_i32 = arith.constant 0 : i32
    %c0_i32_0 = arith.constant 0 : i32
    %c0_i32_1 = arith.constant 0 : i32
    return %c0_i32, %c0_i32_0 : i32, i32
  }
  func.func @transform_4(%arg0: i32) -> (i32, i32) {
    %c0_i32 = arith.constant 0 : i32
    %c0_i32_0 = arith.constant 0 : i32
    %c0_i32_1 = arith.constant 0 : i32
    return %c0_i32, %c0_i32_0 : i32, i32
  }
  func.func @transform_5(%arg0: i32) -> (i32, i32) {
    %c0_i32 = arith.constant 0 : i32
    %c0_i32_0 = arith.constant 0 : i32
    return %arg0, %c0_i32 : i32, i32
  }
}

</mosaic_0001>

<llo_original>
// kernel: interpolator_forward.1
$region0: #{interpolator_forward.1}
  #allocation0 [shape = 'u32[]', space=smem, size = 0x4, offset = 0x4, fixed_abs, tag = 'smem constant byte address 0x4 - core index']
  #allocation1 [shape = 'u32[144,128]{1,0:T(1,128)}', space=vmem, size = 0x12000, scoped, tag = 'internal scratch']
  %s0 = inlined_call_operand.vmem [shape: f32[8,6], index: 0, kind: input, shape index: {}]
  %s1 = inlined_call_operand.vmem [shape: f32[6,256], index: 1, kind: input, shape index: {}]
  %s2 = inlined_call_operand.vmem [shape: f32[1,256], index: 2, kind: input, shape index: {}]
  %s3 = inlined_call_operand.vmem [shape: f32[256,10], index: 3, kind: input, shape index: {}]
  %s4 = inlined_call_operand.vmem [shape: f32[1,10], index: 4, kind: input, shape index: {}]
  %s5 = inlined_call_operand.hbm [shape: f32[8,10], index: 5, kind: output, shape index: {}]
  %s6 = sld [smem:[#allocation0]]
  $region30: #{interpolator_forward.1} parent=0
    _
  %s8 = ssub.s32 1, %s6
  %s9 = scalar_select 0, %s8, %s6
  $region1: #{interpolator_forward.1} parent=0
    #allocation2 [shape = 'u8[4096]{0}', space=vmem, size = 0x1000, scoped, tag = 'output window, operand 0, single buffered']
    #allocation3 [shape = 's32[1]{0}', space=sflag, size = 0x4, scoped, tag = 'scoped memory for interpolator_forward.1']
    %10 = vsyncpa [#allocation3], 0
    // Predicated region
    $region2: #{interpolator_forward.1} parent=1 // pred_check
      _
    $region3: #{interpolator_forward.1} parent=1 // pred_check_branch
      %12 = sbr.rel (0) target = $region5
    $region4: #{interpolator_forward.1} parent=1 // pred_region
      _
    $region5: #{interpolator_forward.1} parent=1 // pred_fallthru
      _
    // Predicated region
    $region6: #{interpolator_forward.1} parent=1 // pred_check
      _
    $region7: #{interpolator_forward.1} parent=1 // pred_check_branch
      %14 = sbr.rel (0) target = $region9
    $region8: #{interpolator_forward.1} parent=1 // pred_region
      _
    $region9: #{interpolator_forward.1} parent=1 // pred_fallthru
      _
    // Predicated region
    $region10: #{interpolator_forward.1} parent=1 // pred_check
      _
    $region11: #{interpolator_forward.1} parent=1 // pred_check_branch
      %16 = sbr.rel (0) target = $region13
    $region12: #{interpolator_forward.1} parent=1 // pred_region
      _
    $region13: #{interpolator_forward.1} parent=1 // pred_fallthru
      _
    // Predicated region
    $region14: #{interpolator_forward.1} parent=1 // pred_check
      _
    $region15: #{interpolator_forward.1} parent=1 // pred_check_branch
      %18 = sbr.rel (0) target = $region17
    $region16: #{interpolator_forward.1} parent=1 // pred_region
      _
    $region17: #{interpolator_forward.1} parent=1 // pred_fallthru
      _
    // Predicated region
    $region18: #{interpolator_forward.1} parent=1 // pred_check
      _
    $region19: #{interpolator_forward.1} parent=1 // pred_check_branch
      %20 = sbr.rel (0) target = $region21
    $region20: #{interpolator_forward.1} parent=1 // pred_region
      _
    $region21: #{interpolator_forward.1} parent=1 // pred_fallthru
      _
    %v21 = vld [vmem:[%s0] sm:$0xff]
    %v22 = vld [vmem:[%s1] sm:$0x3f]
    %v23 = vld [vmem:[%s1 + $0x8] sm:$0x3f]
    %v24 = vld [vmem:[%s2] sm:$0x3]
    %v26 = vlaneseq
    %v27 = vshrl.u32 %v26, 7
    %v28 = vsub.s32 0, %v27
    %v29 = vrot.slane %v24, %v28
    %v30 = vlaneseq
    %v31 = vshrl.u32 %v30, 7
    %v32 = vsub.s32 1, %v31
    %v33 = vrot.slane %v24, %v32
    %vm36 = vcmask 48128
    %v38 = vsel %vm36, %v21, 0
    %vm40 = vcmask 1045504
    %v42 = vsel %vm40, %v22, 0
    %v45 = vsel %vm40, %v23, 0
    %47 = vmatprep.subr.mxu0 %v45
    %48 = vmatpush1.msra.mxu0 %v42
    %49 = vmatprep.subr.mxu0 0.0
    %50 = vmatpush1.msra.mxu0 0.0
    %51 = vmatprep.subr.mxu0 0.0
    %52 = vmatpush1.msra.mxu0 0.0
    %53 = vmatprep.subr.mxu0 0.0
    %54 = vmatpush1.msra.mxu0 0.0
    %55 = vmatprep.subr.mxu0 0.0
    %56 = vmatpush1.msra.mxu0 0.0
    %57 = vmatprep.subr.mxu0 0.0
    %58 = vmatpush1.msra.mxu0 0.0
    %59 = vmatprep.subr.mxu0 0.0
    %60 = vmatpush1.msra.mxu0 0.0
    %61 = vmatprep.subr.mxu0 0.0
    %62 = vmatpush1.msra.mxu0 0.0
    %63 = vmatprep.subr.mxu0 0.0
    %64 = vmatpush1.msra.mxu0 0.0
    %65 = vmatprep.subr.mxu0 0.0
    %66 = vmatpush1.msra.mxu0 0.0
    %67 = vmatprep.subr.mxu0 0.0
    %68 = vmatpush1.msra.mxu0 0.0
    %69 = vmatprep.subr.mxu0 0.0
    %70 = vmatpush1.msra.mxu0 0.0
    %71 = vmatprep.subr.mxu0 0.0
    %72 = vmatpush1.msra.mxu0 0.0
    %73 = vmatprep.subr.mxu0 0.0
    %74 = vmatpush1.msra.mxu0 0.0
    %75 = vmatprep.subr.mxu0 0.0
    %76 = vmatpush1.msra.mxu0 0.0
    %77 = vmatprep.subr.mxu0 0.0
    %78 = vmatpush1.msra.mxu0 0.0
    %79 = vmatprep.subr.mxu0 0.0
    %80 = vmatpush1.msra.mxu0 0.0
    %81 = vmatprep.subr.mxu0 0.0
    %82 = vmatpush1.msra.mxu0 0.0
    %83 = vmatprep.subr.mxu0 0.0
    %84 = vmatpush1.msra.mxu0 0.0
    %85 = vmatprep.subr.mxu0 0.0
    %86 = vmatpush1.msra.mxu0 0.0
    %87 = vmatprep.subr.mxu0 0.0
    %88 = vmatpush1.msra.mxu0 0.0
    %89 = vmatprep.subr.mxu0 0.0
    %90 = vmatpush1.msra.mxu0 0.0
    %91 = vmatprep.subr.mxu0 0.0
    %92 = vmatpush1.msra.mxu0 0.0
    %93 = vmatprep.subr.mxu0 0.0
    %94 = vmatpush1.msra.mxu0 0.0
    %95 = vmatprep.subr.mxu0 0.0
    %96 = vmatpush1.msra.mxu0 0.0
    %97 = vmatprep.subr.mxu0 0.0
    %98 = vmatpush1.msra.mxu0 0.0
    %99 = vmatprep.subr.mxu0 0.0
    %100 = vmatpush1.msra.mxu0 0.0
    %101 = vmatprep.subr.mxu0 0.0
    %102 = vmatpush1.msra.mxu0 0.0
    %103 = vmatprep.subr.mxu0 0.0
    %104 = vmatpush1.msra.mxu0 0.0
    %105 = vmatprep.subr.mxu0 0.0
    %106 = vmatpush1.msra.mxu0 0.0
    %107 = vmatprep.subr.mxu0 0.0
    %108 = vmatpush1.msra.mxu0 0.0
    %109 = vmatprep.subr.mxu0 0.0
    %110 = vmatpush1.msra.mxu0 0.0
    %111 = vmatprep.mubr.f32.mxu0 0.0
    %112 = vmatmul.mubr.f32.gmra.mrb[0].mxu0 %v38
    %v113 = vpop.f32.mrb[0].mxu0
    %v114 = vadd.f32 %v29, %v113
    %v115 = vpop.f32.mrb[0].mxu0
    %v116 = vadd.f32 %v33, %v115
    %117 = vdwg.mxu0
    %v118 = vmax.f32 %v114, 0.0
    %v119 = vmax.f32 %v116, 0.0
    %v120 = vld [vmem:[%s3] sm:$0xff]
    %v121 = vld [vmem:[%s3 + $0x8] sm:$0xff]
    %v122 = vld [vmem:[%s3 + $0x10] sm:$0xff]
    %v123 = vld [vmem:[%s3 + $0x18] sm:$0xff]
    %v124 = vld [vmem:[%s3 + $0x20] sm:$0xff]
    %v125 = vld [vmem:[%s3 + $0x28] sm:$0xff]
    %v126 = vld [vmem:[%s3 + $0x30] sm:$0xff]
    %v127 = vld [vmem:[%s3 + $0x38] sm:$0xff]
    %v128 = vld [vmem:[%s3 + $0x40] sm:$0xff]
    %v129 = vld [vmem:[%s3 + $0x48] sm:$0xff]
    %v130 = vld [vmem:[%s3 + $0x50] sm:$0xff]
    %v131 = vld [vmem:[%s3 + $0x58] sm:$0xff]
    %v132 = vld [vmem:[%s3 + $0x60] sm:$0xff]
    %v133 = vld [vmem:[%s3 + $0x68] sm:$0xff]
    %v134 = vld [vmem:[%s3 + $0x70] sm:$0xff]
    %v135 = vld [vmem:[%s3 + $0x78] sm:$0xff]
    %v136 = vld [vmem:[%s3 + $0x80] sm:$0xff]
    %v137 = vld [vmem:[%s3 + $0x88] sm:$0xff]
    %v138 = vld [vmem:[%s3 + $0x90] sm:$0xff]
    %v139 = vld [vmem:[%s3 + $0x98] sm:$0xff]
    %v140 = vld [vmem:[%s3 + $0xa0] sm:$0xff]
    %v141 = vld [vmem:[%s3 + $0xa8] sm:$0xff]
    %v142 = vld [vmem:[%s3 + $0xb0] sm:$0xff]
    %v143 = vld [vmem:[%s3 + $0xb8] sm:$0xff]
    %v144 = vld [vmem:[%s3 + $0xc0] sm:$0xff]
    %v145 = vld [vmem:[%s3 + $0xc8] sm:$0xff]
    %v146 = vld [vmem:[%s3 + $0xd0] sm:$0xff]
    %v147 = vld [vmem:[%s3 + $0xd8] sm:$0xff]
    %v148 = vld [vmem:[%s3 + $0xe0] sm:$0xff]
    %v149 = vld [vmem:[%s3 + $0xe8] sm:$0xff]
    %v150 = vld [vmem:[%s3 + $0xf0] sm:$0xff]
    %v151 = vld [vmem:[%s3 + $0xf8] sm:$0xff]
    %v152 = vld [vmem:[%s4] sm:$0x1]
    %v154 = vlaneseq
    %v155 = vshrl.u32 %v154, 7
    %v156 = vsub.s32 0, %v155
    %v157 = vrot.slane %v152, %v156
    %159 = vmatprep.subr.mxu0 0.0
    %160 = vmatpush1.msra.mxu0 %v120
    %161 = vmatprep.subr.mxu0 0.0
    %162 = vmatpush1.msra.mxu0 %v121
    %163 = vmatprep.subr.mxu0 0.0
    %164 = vmatpush1.msra.mxu0 %v122
    %165 = vmatprep.subr.mxu0 0.0
    %166 = vmatpush1.msra.mxu0 %v123
    %167 = vmatprep.subr.mxu0 0.0
    %168 = vmatpush1.msra.mxu0 %v124
    %169 = vmatprep.subr.mxu0 0.0
    %170 = vmatpush1.msra.mxu0 %v125
    %171 = vmatprep.subr.mxu0 0.0
    %172 = vmatpush1.msra.mxu0 %v126
    %173 = vmatprep.subr.mxu0 0.0
    %174 = vmatpush1.msra.mxu0 %v127
    %175 = vmatprep.subr.mxu0 0.0
    %176 = vmatpush1.msra.mxu0 %v128
    %177 = vmatprep.subr.mxu0 0.0
    %178 = vmatpush1.msra.mxu0 %v129
    %179 = vmatprep.subr.mxu0 0.0
    %180 = vmatpush1.msra.mxu0 %v130
    %181 = vmatprep.subr.mxu0 0.0
    %182 = vmatpush1.msra.mxu0 %v131
    %183 = vmatprep.subr.mxu0 0.0
    %184 = vmatpush1.msra.mxu0 %v132
    %185 = vmatprep.subr.mxu0 0.0
    %186 = vmatpush1.msra.mxu0 %v133
    %187 = vmatprep.subr.mxu0 0.0
    %188 = vmatpush1.msra.mxu0 %v134
    %189 = vmatprep.subr.mxu0 0.0
    %190 = vmatpush1.msra.mxu0 %v135
    %191 = vmatprep.subr.mxu0 0.0
    %192 = vmatpush1.msra.mxu0 %v136
    %193 = vmatprep.subr.mxu0 0.0
    %194 = vmatpush1.msra.mxu0 %v137
    %195 = vmatprep.subr.mxu0 0.0
    %196 = vmatpush1.msra.mxu0 %v138
    %197 = vmatprep.subr.mxu0 0.0
    %198 = vmatpush1.msra.mxu0 %v139
    %199 = vmatprep.subr.mxu0 0.0
    %200 = vmatpush1.msra.mxu0 %v140
    %201 = vmatprep.subr.mxu0 0.0
    %202 = vmatpush1.msra.mxu0 %v141
    %203 = vmatprep.subr.mxu0 0.0
    %204 = vmatpush1.msra.mxu0 %v142
    %205 = vmatprep.subr.mxu0 0.0
    %206 = vmatpush1.msra.mxu0 %v143
    %207 = vmatprep.subr.mxu0 0.0
    %208 = vmatpush1.msra.mxu0 %v144
    %209 = vmatprep.subr.mxu0 0.0
    %210 = vmatpush1.msra.mxu0 %v145
    %211 = vmatprep.subr.mxu0 0.0
    %212 = vmatpush1.msra.mxu0 %v146
    %213 = vmatprep.subr.mxu0 0.0
    %214 = vmatpush1.msra.mxu0 %v147
    %215 = vmatprep.subr.mxu0 0.0
    %216 = vmatpush1.msra.mxu0 %v148
    %217 = vmatprep.subr.mxu0 0.0
    %218 = vmatpush1.msra.mxu0 %v149
    %219 = vmatprep.subr.mxu0 0.0
    %220 = vmatpush1.msra.mxu0 %v150
    %221 = vmatprep.subr.mxu0 0.0
    %222 = vmatpush1.msra.mxu0 %v151
    %223 = vmatprep.mubr.f32.mxu0 %v119
    %224 = vmatmul.mubr.f32.gmra.mrb[0].mxu0 %v118
    %v225 = vpop.f32.mrb[0].mxu0
    %v226 = vadd.f32 %v157, %v225
    %v227 = vpop.f32.mrb[0].mxu0
    %228 = vdwg.mxu0
    %vm229 = vcmask 80896
    %230 = vst.msk [vmem:[#allocation2] sm:$0xff] %vm229, %v226
    // Predicated region
    $region22: #{interpolator_forward.1} parent=1 // pred_check
      _
    $region23: #{interpolator_forward.1} parent=1 // pred_check_branch
      %232 = sbr.rel (0) target = $region25
    $region24: #{interpolator_forward.1} parent=1 // pred_region
      %s234 = ssub.s32 128, 128
      %235 = vsyncadd [#allocation3], %s234
      %s237 = sshll.u32 [#allocation2], 4
      %s238 = int_to_ptr.vmem [resolvable:$true] %s237
      %240 = dma.vmem_to_hbm [thread:$0]  %s238, 128, %s5, [#allocation3]
    $region25: #{interpolator_forward.1} parent=1 // pred_fallthru
      _
    // Predicated region
    $region26: #{interpolator_forward.1} parent=1 // pred_check
      _
    $region27: #{interpolator_forward.1} parent=1 // pred_check_branch
      %242 = sbr.rel (0) target = $region29
    $region28: #{interpolator_forward.1} parent=1 // pred_region
      %243 = dma.done [#allocation3], 128
    $region29: #{interpolator_forward.1} parent=1 // pred_fallthru
      _
    %244 = vsyncpa [#allocation3], 1

</llo_original>
